<compile_context>
chip_gen: v5e
topology: v5e:2x2
jax: 0.10.0
libtpu: 0.0.40
codegen_flags: <defaults>
</compile_context>

<pallas_src>
import math
from functools import partial

import jax
import jax.numpy as jnp
from jax import lax
from jax.experimental import pallas as pl
from jax.experimental.pallas import tpu as pltpu


_LANE = 128           # vreg lane width
_STRIP = 16           # rows per in-kernel sub-strip (2 f32 vregs / temporary)
_MAX_TILE_ROWS = 512  # rows (x128 boxes) per grid step: ~2.3 MiB/step input


def _round_up(x, m):
    return ((x + m - 1) // m) * m


def _siou_kernel(data_ref, out_ref, *, n, tile_rows, strip, eps, neg_gamma,
                 has_weight, reduce_mode):
    """One grid step = `tile_rows` rows x 128 lanes of boxes.

    data_ref : (planes, tile_rows, 128) f32 VMEM tile.
               planes 0..3 = pred  x1,y1,x2,y2
               planes 4..7 = target x1,y1,x2,y2
               plane  8    = per-box weight (only when has_weight)
    out_ref  : reduce_mode -> (1, 8, 128) per-tile partial sum of weighted loss
               else        -> (tile_rows, 128) weighted per-box loss
    The tile is strip-mined in `strip`-row chunks so only ~2 vregs are live per
    temporary (no spills / VMEM store-slot pressure) while the DMA block stays
    large.
    """
    tile_row0 = pl.program_id(0) * tile_rows
    row_iota = lax.broadcasted_iota(jnp.int32, (strip, _LANE), 0)
    lane_iota = lax.broadcasted_iota(jnp.int32, (strip, _LANE), 1)

    def strip_body(s, acc):
        off = pl.multiple_of(s * strip, strip)
        rows = pl.ds(off, strip)
        b1_x1 = data_ref[0, rows, :]
        b1_y1 = data_ref[1, rows, :]
        b1_x2 = data_ref[2, rows, :]
        b1_y2 = data_ref[3, rows, :]
        b2_x1 = data_ref[4, rows, :]
        b2_y1 = data_ref[5, rows, :]
        b2_x2 = data_ref[6, rows, :]
        b2_y2 = data_ref[7, rows, :]

        w1 = b1_x2 - b1_x1
        h1_raw = b1_y2 - b1_y1
        w2 = b2_x2 - b2_x1
        h2_raw = b2_y2 - b2_y1
        h1 = h1_raw + eps
        h2 = h2_raw + eps

        # ---- IoU (exact division: approx reciprocals cost ~1e-2 abs error) --
        iw = jnp.maximum(jnp.minimum(b1_x2, b2_x2) - jnp.maximum(b1_x1, b2_x1), 0.0)
        ih = jnp.maximum(jnp.minimum(b1_y2, b2_y2) - jnp.maximum(b1_y1, b2_y1), 0.0)
        overlap = iw * ih
        union = w1 * h1_raw + w2 * h2_raw - overlap + eps
        ious = overlap / union

        # ---- enclosing box ----
        cw = jnp.maximum(jnp.maximum(b1_x2, b2_x2) - jnp.minimum(b1_x1, b2_x1), eps)
        ch = jnp.maximum(jnp.maximum(b1_y2, b2_y2) - jnp.minimum(b1_y1, b2_y1), eps)

        # ---- angle cost ----
        # cos(2*asin(x) - pi/2) = 2*x*sqrt(1-x^2); with x in {|s_cw|,|s_ch|}/sigma
        # and (|s_cw|/sigma)^2 + (|s_ch|/sigma)^2 == 1, both branches of the
        # reference's where() equal 2*|s_cw*s_ch|/sigma^2 -> asin/cos/sqrt/select
        # all vanish (exact identity).
        s_cw = (b2_x1 + b2_x2 - b1_x1 - b1_x2) * 0.5 + eps
        s_ch = (b2_y1 + b2_y2 - b1_y1 - b1_y2) * 0.5 + eps
        d2 = s_cw * s_cw + s_ch * s_ch
        angle_cost = 2.0 * jnp.abs(s_cw * s_ch) / d2

        # ---- distance cost ----
        rx = s_cw / cw
        ry = s_ch / ch
        rho_x = rx * rx
        rho_y = ry * ry
        gamma = (angle_cost - 2.0) if neg_gamma else (2.0 - angle_cost)
        distance_cost = 2.0 - jnp.exp(gamma * rho_x) - jnp.exp(gamma * rho_y)

        # ---- shape cost ----
        omiga_w = jnp.abs(w1 - w2) / jnp.maximum(w1, w2)
        omiga_h = jnp.abs(h1 - h2) / jnp.maximum(h1, h2)
        ew = 1.0 - jnp.exp(-omiga_w)
        eh = 1.0 - jnp.exp(-omiga_h)
        ew2 = ew * ew
        eh2 = eh * eh
        shape_cost = ew2 * ew2 + eh2 * eh2

        sious = ious - 0.5 * (distance_cost + shape_cost)
        loss = 1.0 - jnp.clip(sious, -1.0, 1.0)

        # Mask only the padded tail (rows beyond n; their all-zero boxes give
        # NaN via 0/0) and do it BEFORE the weight multiply, so a real
        # degenerate box with weight 0 still propagates NaN like torch does.
        box_idx = (tile_row0 + off + row_iota) * _LANE + lane_iota
        out = jnp.where(box_idx < n, loss, 0.0)
        if has_weight:
            out = out * data_ref[8, rows, :]

        if reduce_mode:
            folded = out[0:8, :]
            for g in range(1, strip // 8):
                folded = folded + out[g * 8:(g + 1) * 8, :]
            return acc + folded
        out_ref[rows, :] = out
        return acc

    acc = lax.fori_loop(0, tile_rows // strip, strip_body,
                        jnp.zeros((8, _LANE), jnp.float32))
    if reduce_mode:
        out_ref[0, :, :] = acc


def pack_siou_inputs(pred, target, weight=None, *, max_tile_rows=None):
    """Pack (n,4) boxes [+ per-box weight] into the kernel's planar layout.

    Returns (data, n, num_tiles, tile_rows, has_weight); `data` is a single
    lane-dense (planes, num_tiles*tile_rows, 128) f32 slab.  This is the only
    HBM relayout pass in the whole pipeline (one fused concat+pad+reshape+
    transpose under jit).
    TODO(synk): ideally the box producer emits this planar layout directly
    (and/or bf16 coordinates) so this pass disappears entirely; an (n,4)
    interleaved input inherently needs one relayout on TPU.
    """
    pred = jnp.asarray(pred, jnp.float32)
    target = jnp.asarray(target, jnp.float32)
    n = pred.shape[0]

    has_weight = weight is not None
    cols = [pred, target]
    if has_weight:
        w = jnp.asarray(weight, jnp.float32)
        if w.ndim > 1:              # per-coordinate weight -> per-box weight
            w = w.mean(-1)
        cols.append(w[:, None])

    rows_needed = max(-(-n // _LANE), 1)
    cap = _MAX_TILE_ROWS if max_tile_rows is None else max_tile_rows
    cap = max(_STRIP, _round_up(cap, _STRIP))
    # Aim for >= 2 grid steps when there is enough work so the "parallel"
    # grid axis can shard across both v7x TensorCores.
    target_rows = -(-rows_needed // 2) if rows_needed > _STRIP else rows_needed
    tile_rows = min(cap, _round_up(max(target_rows, 1), _STRIP))
    num_tiles = -(-rows_needed // tile_rows)
    r_total = num_tiles * tile_rows
    pad = r_total * _LANE - n

    packed = jnp.concatenate(cols, axis=1)            # (n, 8 or 9)
    packed = jnp.pad(packed, ((0, pad), (0, 0)))      # zero tail (masked in-kernel)
    data = packed.reshape(r_total, _LANE, packed.shape[1]).transpose(2, 0, 1)
    return data, n, num_tiles, tile_rows, has_weight


def _run_siou_kernel(data, n, num_tiles, tile_rows, *, eps, neg_gamma,
                     has_weight, reduce_mode):
    n_planes = data.shape[0]
    r_total = num_tiles * tile_rows
    n_pad = r_total * _LANE
    kernel = partial(_siou_kernel, n=int(n), tile_rows=tile_rows, strip=_STRIP,
                     eps=float(eps), neg_gamma=bool(neg_gamma),
                     has_weight=has_weight, reduce_mode=reduce_mode)
    if reduce_mode:
        out_shape = jax.ShapeDtypeStruct((num_tiles, 8, _LANE), jnp.float32)
        out_spec = pl.BlockSpec((1, 8, _LANE), lambda i: (i, 0, 0))
    else:
        out_shape = jax.ShapeDtypeStruct((r_total, _LANE), jnp.float32)
        out_spec = pl.BlockSpec((tile_rows, _LANE), lambda i: (i, 0))
    return pl.pallas_call(
        kernel,
        out_shape=out_shape,
        grid=(num_tiles,),
        in_specs=[pl.BlockSpec((n_planes, tile_rows, _LANE), lambda i: (0, i, 0))],
        out_specs=out_spec,
        compiler_params=pltpu.CompilerParams(
            dimension_semantics=("parallel",),
            vmem_limit_bytes=32 * 1024 * 1024),
        cost_estimate=pl.CostEstimate(
            flops=60 * n_pad,
            transcendentals=10 * n_pad,
            bytes_accessed=4 * (n_planes + (0 if reduce_mode else 1)) * n_pad),
    )(data)


@partial(jax.jit, static_argnames=("eps", "neg_gamma", "reduction",
                                   "avg_factor", "loss_weight", "max_tile_rows"))
def siou_loss(pred, target, weight=None, *, eps=1e-6, neg_gamma=False,
              reduction="mean", avg_factor=None, loss_weight=1.0,
              max_tile_rows=None):
    """Equivalent of SIoULoss.forward (mmdet weighted_loss reduction rules).

    TODO(synk): the torch forward's data-dependent early exit when
    `not torch.any(weight > 0)` (returning (pred*weight).sum()) is not
    replicated; with non-negative weights the forward value (0.0) agrees on
    the 'mean'/'sum' paths anyway.
    """
    assert reduction in ("none", "mean", "sum")
    data, n, num_tiles, tile_rows, has_weight = pack_siou_inputs(
        pred, target, weight, max_tile_rows=max_tile_rows)
    reduce_mode = reduction != "none"
    out = _run_siou_kernel(data, n, num_tiles, tile_rows, eps=eps,
                           neg_gamma=neg_gamma, has_weight=has_weight,
                           reduce_mode=reduce_mode)
    if not reduce_mode:
        # (R,128) weighted per-box loss; padded tail already zeroed in-kernel.
        return loss_weight * out.reshape(-1)[:n]
    total = jnp.sum(out)                        # sum_i loss_i * w_i
    if reduction == "sum":
        return loss_weight * total
    if avg_factor is None:
        return loss_weight * (total / n)
    return loss_weight * (total / (avg_factor + jnp.finfo(jnp.float32).eps))


def _siou_reference(pred, target, eps=1e-6, neg_gamma=False):
    """Pure-JAX transcription of CircumSIoULoss (per-element, no reduction)."""
    lt = jnp.maximum(pred[:, :2], target[:, :2])
    rb = jnp.minimum(pred[:, 2:], target[:, 2:])
    wh = jnp.maximum(rb - lt, 0)
    overlap = wh[:, 0] * wh[:, 1]
    ap = (pred[:, 2] - pred[:, 0]) * (pred[:, 3] - pred[:, 1])
    ag = (target[:, 2] - target[:, 0]) * (target[:, 3] - target[:, 1])
    union = ap + ag - overlap + eps
    ious = overlap / union
    enc_x1y1 = jnp.minimum(pred[:, :2], target[:, :2])
    enc_x2y2 = jnp.maximum(pred[:, 2:], target[:, 2:])
    enc_wh = jnp.maximum(enc_x2y2 - enc_x1y1, eps)
    cw, ch = enc_wh[:, 0], enc_wh[:, 1]
    b1_x1, b1_y1, b1_x2, b1_y2 = pred[:, 0], pred[:, 1], pred[:, 2], pred[:, 3]
    b2_x1, b2_y1, b2_x2, b2_y2 = target[:, 0], target[:, 1], target[:, 2], target[:, 3]
    w1, h1 = b1_x2 - b1_x1, b1_y2 - b1_y1 + eps
    w2, h2 = b2_x2 - b2_x1, b2_y2 - b2_y1 + eps
    s_cw = (b2_x1 + b2_x2 - b1_x1 - b1_x2) * 0.5 + eps
    s_ch = (b2_y1 + b2_y2 - b1_y1 - b1_y2) * 0.5 + eps
    sigma = jnp.sqrt(s_cw ** 2 + s_ch ** 2)
    sa1 = jnp.abs(s_cw) / sigma
    sa2 = jnp.abs(s_ch) / sigma
    thr = math.pow(2, 0.5) / 2
    sa = jnp.where(sa1 > thr, sa2, sa1)
    angle_cost = jnp.cos(jnp.arcsin(sa) * 2 - math.pi / 2)
    rho_x = (s_cw / cw) ** 2
    rho_y = (s_ch / ch) ** 2
    gamma = angle_cost - 2 if neg_gamma else 2 - angle_cost
    distance_cost = 2 - jnp.exp(gamma * rho_x) - jnp.exp(gamma * rho_y)
    omiga_w = jnp.abs(w1 - w2) / jnp.maximum(w1, w2)
    omiga_h = jnp.abs(h1 - h2) / jnp.maximum(h1, h2)
    shape_cost = (1 - jnp.exp(-omiga_w)) ** 4 + (1 - jnp.exp(-omiga_h)) ** 4
    sious = ious - 0.5 * (distance_cost + shape_cost)
    return 1 - jnp.clip(sious, -1.0, 1.0)


if __name__ == "__main__":
    # Exact divisions in the kernel -> only fp-ordering / exp-impl noise left;
    # 1e-3 still catches any formula/layout/masking bug.
    TOL = 1e-3

    key = jax.random.PRNGKey(0)
    k1, k2, k3, k4, k5 = jax.random.split(key, 5)

    def make_boxes(ka, kb, n):
        xy = jax.random.uniform(ka, (n, 2), minval=0.0, maxval=10.0)
        wh = jax.random.uniform(kb, (n, 2), minval=1.0, maxval=5.0)
        return jnp.concatenate([xy, xy + wh], axis=1).astype(jnp.float32)

    # --- case 1: module defaults (mean, no weight), tiny n ---
    n1 = 8
    pred1 = make_boxes(k1, k2, n1)
    target1 = make_boxes(k3, k4, n1)
    out1 = jax.block_until_ready(siou_loss(pred1, target1))
    ref1 = jnp.mean(_siou_reference(pred1, target1, eps=1e-6))
    assert jnp.allclose(out1, ref1, rtol=TOL, atol=TOL), (float(out1), float(ref1))

    # --- case 2: per-box weights, 'none' reduction, ragged n (padding mask) ---
    k6, k7, k8, k9, k10 = jax.random.split(k5, 5)
    n2 = 300
    pred2 = make_boxes(k6, k7, n2)
    target2 = make_boxes(k8, k9, n2)
    w2 = jax.random.uniform(k10, (n2,), minval=0.0, maxval=2.0).astype(jnp.float32)
    out2 = jax.block_until_ready(siou_loss(pred2, target2, weight=w2, reduction="none"))
    ref2 = _siou_reference(pred2, target2, eps=1e-6) * w2
    assert out2.shape == (n2,)
    assert jnp.allclose(out2, ref2, rtol=TOL, atol=TOL), \
        float(jnp.max(jnp.abs(out2 - ref2)))

    # --- case 3: multi-tile grid (default sizing), 'sum', neg_gamma=True ---
    k11, k12, k13, k14, k15 = jax.random.split(k10, 5)
    n3 = 5000
    pred3 = make_boxes(k11, k12, n3)
    target3 = make_boxes(k13, k14, n3)
    w3 = jax.random.uniform(k15, (n3,), minval=0.0, maxval=1.0).astype(jnp.float32)
    _, _, nt3, _, _ = pack_siou_inputs(pred3, target3, w3)
    assert nt3 >= 2, nt3                      # "parallel" axis really has >1 step
    out3 = jax.block_until_ready(
        siou_loss(pred3, target3, weight=w3, reduction="sum", neg_gamma=True))
    ref3 = jnp.sum(_siou_reference(pred3, target3, eps=1e-6, neg_gamma=True) * w3)
    assert jnp.allclose(out3, ref3, rtol=TOL, atol=TOL * n3), (float(out3), float(ref3))

    # --- case 4: per-coordinate weight, 'mean' with avg_factor, small tiles ---
    k16, k17, k18, k19, k20 = jax.random.split(k15, 5)
    n4 = 3000
    pred4 = make_boxes(k16, k17, n4)
    target4 = make_boxes(k18, k19, n4)
    w4 = jax.random.uniform(k20, (n4, 4), minval=0.0, maxval=2.0).astype(jnp.float32)
    out4 = jax.block_until_ready(
        siou_loss(pred4, target4, weight=w4, reduction="mean", avg_factor=777.0,
                  max_tile_rows=16))
    ref4 = jnp.sum(_siou_reference(pred4, target4, eps=1e-6) * w4.mean(-1)) \
        / (777.0 + jnp.finfo(jnp.float32).eps)
    assert jnp.allclose(out4, ref4, rtol=TOL, atol=TOL), (float(out4), float(ref4))

    print("KERNEL_OK")
</pallas_src>

<mosaic_0001>
module attributes {stable_mosaic.version = 11 : i64} {
  func.func @_siou_kernel(%arg0: i32, %arg1: memref<8x16x128xf32, #tpu.memory_space<vmem>>, %arg2: memref<1x8x128xf32, #tpu.memory_space<vmem>>) attributes {dimension_semantics = [#tpu.dimension_semantics<parallel>], iteration_bounds = array<i64: 1>, scalar_prefetch = 0 : i64, scratch_operands = 0 : i64, tpu.core_type = #tpu.core_type<tc>, window_params = [{transform_indices = @transform_0, window_bounds = array<i64: 8, 16, 128>}, {transform_indices = @transform_1, window_bounds = array<i64: 1, 8, 128>}]} {
    %c16_i32 = arith.constant 16 : i32
    %0 = arith.muli %arg0, %c16_i32 : i32
    %1 = tpu.iota {dimensions = array<i32: 0>} : vector<16x128xi32>
    %2 = tpu.iota {dimensions = array<i32: 1>} : vector<16x128xi32>
    %cst = arith.constant 0.000000e+00 : f32
    %3 = vector.broadcast %cst : f32 to vector<8x128xf32>
    %c0_i32 = arith.constant 0 : i32
    %c16_i32_0 = arith.constant 16 : i32
    %4 = arith.muli %c0_i32, %c16_i32_0 : i32
    %5 = tpu.assume_multiple %4, 16 : i32
    %c0 = arith.constant 0 : index
    %6 = arith.index_cast %5 : i32 to index
    %c0_1 = arith.constant 0 : index
    %7 = vector.load %arg1[%c0, %6, %c0_1] : memref<8x16x128xf32, #tpu.memory_space<vmem>>, vector<1x16x128xf32>
    %8 = vector.shape_cast %7 : vector<1x16x128xf32> to vector<16x128xf32>
    %c1 = arith.constant 1 : index
    %9 = arith.index_cast %5 : i32 to index
    %c0_2 = arith.constant 0 : index
    %10 = vector.load %arg1[%c1, %9, %c0_2] : memref<8x16x128xf32, #tpu.memory_space<vmem>>, vector<1x16x128xf32>
    %11 = vector.shape_cast %10 : vector<1x16x128xf32> to vector<16x128xf32>
    %c2 = arith.constant 2 : index
    %12 = arith.index_cast %5 : i32 to index
    %c0_3 = arith.constant 0 : index
    %13 = vector.load %arg1[%c2, %12, %c0_3] : memref<8x16x128xf32, #tpu.memory_space<vmem>>, vector<1x16x128xf32>
    %14 = vector.shape_cast %13 : vector<1x16x128xf32> to vector<16x128xf32>
    %c3 = arith.constant 3 : index
    %15 = arith.index_cast %5 : i32 to index
    %c0_4 = arith.constant 0 : index
    %16 = vector.load %arg1[%c3, %15, %c0_4] : memref<8x16x128xf32, #tpu.memory_space<vmem>>, vector<1x16x128xf32>
    %17 = vector.shape_cast %16 : vector<1x16x128xf32> to vector<16x128xf32>
    %c4 = arith.constant 4 : index
    %18 = arith.index_cast %5 : i32 to index
    %c0_5 = arith.constant 0 : index
    %19 = vector.load %arg1[%c4, %18, %c0_5] : memref<8x16x128xf32, #tpu.memory_space<vmem>>, vector<1x16x128xf32>
    %20 = vector.shape_cast %19 : vector<1x16x128xf32> to vector<16x128xf32>
    %c5 = arith.constant 5 : index
    %21 = arith.index_cast %5 : i32 to index
    %c0_6 = arith.constant 0 : index
    %22 = vector.load %arg1[%c5, %21, %c0_6] : memref<8x16x128xf32, #tpu.memory_space<vmem>>, vector<1x16x128xf32>
    %23 = vector.shape_cast %22 : vector<1x16x128xf32> to vector<16x128xf32>
    %c6 = arith.constant 6 : index
    %24 = arith.index_cast %5 : i32 to index
    %c0_7 = arith.constant 0 : index
    %25 = vector.load %arg1[%c6, %24, %c0_7] : memref<8x16x128xf32, #tpu.memory_space<vmem>>, vector<1x16x128xf32>
    %26 = vector.shape_cast %25 : vector<1x16x128xf32> to vector<16x128xf32>
    %c7 = arith.constant 7 : index
    %27 = arith.index_cast %5 : i32 to index
    %c0_8 = arith.constant 0 : index
    %28 = vector.load %arg1[%c7, %27, %c0_8] : memref<8x16x128xf32, #tpu.memory_space<vmem>>, vector<1x16x128xf32>
    %29 = vector.shape_cast %28 : vector<1x16x128xf32> to vector<16x128xf32>
    %30 = arith.subf %14, %8 : vector<16x128xf32>
    %31 = arith.subf %17, %11 : vector<16x128xf32>
    %32 = arith.subf %26, %20 : vector<16x128xf32>
    %33 = arith.subf %29, %23 : vector<16x128xf32>
    %cst_9 = arith.constant 9.99999997E-7 : f32
    %34 = vector.broadcast %cst_9 : f32 to vector<16x128xf32>
    %35 = arith.addf %31, %34 : vector<16x128xf32>
    %cst_10 = arith.constant 9.99999997E-7 : f32
    %36 = vector.broadcast %cst_10 : f32 to vector<16x128xf32>
    %37 = arith.addf %33, %36 : vector<16x128xf32>
    %38 = arith.minimumf %14, %26 : vector<16x128xf32>
    %39 = arith.maximumf %8, %20 : vector<16x128xf32>
    %40 = arith.subf %38, %39 : vector<16x128xf32>
    %cst_11 = arith.constant 0.000000e+00 : f32
    %41 = vector.broadcast %cst_11 : f32 to vector<16x128xf32>
    %42 = arith.maximumf %40, %41 : vector<16x128xf32>
    %43 = arith.minimumf %17, %29 : vector<16x128xf32>
    %44 = arith.maximumf %11, %23 : vector<16x128xf32>
    %45 = arith.subf %43, %44 : vector<16x128xf32>
    %cst_12 = arith.constant 0.000000e+00 : f32
    %46 = vector.broadcast %cst_12 : f32 to vector<16x128xf32>
    %47 = arith.maximumf %45, %46 : vector<16x128xf32>
    %48 = arith.mulf %42, %47 : vector<16x128xf32>
    %49 = arith.mulf %30, %31 : vector<16x128xf32>
    %50 = arith.mulf %32, %33 : vector<16x128xf32>
    %51 = arith.addf %49, %50 : vector<16x128xf32>
    %52 = arith.subf %51, %48 : vector<16x128xf32>
    %cst_13 = arith.constant 9.99999997E-7 : f32
    %53 = vector.broadcast %cst_13 : f32 to vector<16x128xf32>
    %54 = arith.addf %52, %53 : vector<16x128xf32>
    %55 = arith.divf %48, %54 : vector<16x128xf32>
    %56 = arith.maximumf %14, %26 : vector<16x128xf32>
    %57 = arith.minimumf %8, %20 : vector<16x128xf32>
    %58 = arith.subf %56, %57 : vector<16x128xf32>
    %cst_14 = arith.constant 9.99999997E-7 : f32
    %59 = vector.broadcast %cst_14 : f32 to vector<16x128xf32>
    %60 = arith.maximumf %58, %59 : vector<16x128xf32>
    %61 = arith.maximumf %17, %29 : vector<16x128xf32>
    %62 = arith.minimumf %11, %23 : vector<16x128xf32>
    %63 = arith.subf %61, %62 : vector<16x128xf32>
    %cst_15 = arith.constant 9.99999997E-7 : f32
    %64 = vector.broadcast %cst_15 : f32 to vector<16x128xf32>
    %65 = arith.maximumf %63, %64 : vector<16x128xf32>
    %66 = arith.addf %20, %26 : vector<16x128xf32>
    %67 = arith.subf %66, %8 : vector<16x128xf32>
    %68 = arith.subf %67, %14 : vector<16x128xf32>
    %cst_16 = arith.constant 5.000000e-01 : f32
    %69 = vector.broadcast %cst_16 : f32 to vector<16x128xf32>
    %70 = arith.mulf %68, %69 : vector<16x128xf32>
    %cst_17 = arith.constant 9.99999997E-7 : f32
    %71 = vector.broadcast %cst_17 : f32 to vector<16x128xf32>
    %72 = arith.addf %70, %71 : vector<16x128xf32>
    %73 = arith.addf %23, %29 : vector<16x128xf32>
    %74 = arith.subf %73, %11 : vector<16x128xf32>
    %75 = arith.subf %74, %17 : vector<16x128xf32>
    %cst_18 = arith.constant 5.000000e-01 : f32
    %76 = vector.broadcast %cst_18 : f32 to vector<16x128xf32>
    %77 = arith.mulf %75, %76 : vector<16x128xf32>
    %cst_19 = arith.constant 9.99999997E-7 : f32
    %78 = vector.broadcast %cst_19 : f32 to vector<16x128xf32>
    %79 = arith.addf %77, %78 : vector<16x128xf32>
    %80 = arith.mulf %72, %72 : vector<16x128xf32>
    %81 = arith.mulf %79, %79 : vector<16x128xf32>
    %82 = arith.addf %80, %81 : vector<16x128xf32>
    %83 = arith.mulf %72, %79 : vector<16x128xf32>
    %84 = math.absf %83 : vector<16x128xf32>
    %cst_20 = arith.constant 2.000000e+00 : f32
    %85 = vector.broadcast %cst_20 : f32 to vector<16x128xf32>
    %86 = arith.mulf %85, %84 : vector<16x128xf32>
    %87 = arith.divf %86, %82 : vector<16x128xf32>
    %88 = arith.divf %72, %60 : vector<16x128xf32>
    %89 = arith.divf %79, %65 : vector<16x128xf32>
    %90 = arith.mulf %88, %88 : vector<16x128xf32>
    %91 = arith.mulf %89, %89 : vector<16x128xf32>
    %cst_21 = arith.constant 2.000000e+00 : f32
    %92 = vector.broadcast %cst_21 : f32 to vector<16x128xf32>
    %93 = arith.subf %92, %87 : vector<16x128xf32>
    %94 = arith.mulf %93, %90 : vector<16x128xf32>
    %95 = math.exp %94 : vector<16x128xf32>
    %cst_22 = arith.constant 2.000000e+00 : f32
    %96 = vector.broadcast %cst_22 : f32 to vector<16x128xf32>
    %97 = arith.subf %96, %95 : vector<16x128xf32>
    %98 = arith.mulf %93, %91 : vector<16x128xf32>
    %99 = math.exp %98 : vector<16x128xf32>
    %100 = arith.subf %97, %99 : vector<16x128xf32>
    %101 = arith.subf %30, %32 : vector<16x128xf32>
    %102 = math.absf %101 : vector<16x128xf32>
    %103 = arith.maximumf %30, %32 : vector<16x128xf32>
    %104 = arith.divf %102, %103 : vector<16x128xf32>
    %105 = arith.subf %35, %37 : vector<16x128xf32>
    %106 = math.absf %105 : vector<16x128xf32>
    %107 = arith.maximumf %35, %37 : vector<16x128xf32>
    %108 = arith.divf %106, %107 : vector<16x128xf32>
    %cst_23 = arith.constant 0.000000e+00 : f32
    %109 = vector.broadcast %cst_23 : f32 to vector<16x128xf32>
    %110 = arith.subf %109, %104 : vector<16x128xf32>
    %111 = math.exp %110 : vector<16x128xf32>
    %cst_24 = arith.constant 1.000000e+00 : f32
    %112 = vector.broadcast %cst_24 : f32 to vector<16x128xf32>
    %113 = arith.subf %112, %111 : vector<16x128xf32>
    %cst_25 = arith.constant 0.000000e+00 : f32
    %114 = vector.broadcast %cst_25 : f32 to vector<16x128xf32>
    %115 = arith.subf %114, %108 : vector<16x128xf32>
    %116 = math.exp %115 : vector<16x128xf32>
    %cst_26 = arith.constant 1.000000e+00 : f32
    %117 = vector.broadcast %cst_26 : f32 to vector<16x128xf32>
    %118 = arith.subf %117, %116 : vector<16x128xf32>
    %119 = arith.mulf %113, %113 : vector<16x128xf32>
    %120 = arith.mulf %118, %118 : vector<16x128xf32>
    %121 = arith.mulf %119, %119 : vector<16x128xf32>
    %122 = arith.mulf %120, %120 : vector<16x128xf32>
    %123 = arith.addf %121, %122 : vector<16x128xf32>
    %124 = arith.addf %100, %123 : vector<16x128xf32>
    %cst_27 = arith.constant 5.000000e-01 : f32
    %125 = vector.broadcast %cst_27 : f32 to vector<16x128xf32>
    %126 = arith.mulf %125, %124 : vector<16x128xf32>
    %127 = arith.subf %55, %126 : vector<16x128xf32>
    %cst_28 = arith.constant -1.000000e+00 : f32
    %cst_29 = arith.constant 1.000000e+00 : f32
    %128 = vector.broadcast %cst_28 : f32 to vector<16x128xf32>
    %129 = arith.maximumf %128, %127 : vector<16x128xf32>
    %130 = vector.broadcast %cst_29 : f32 to vector<16x128xf32>
    %131 = arith.minimumf %130, %129 : vector<16x128xf32>
    %cst_30 = arith.constant 1.000000e+00 : f32
    %132 = vector.broadcast %cst_30 : f32 to vector<16x128xf32>
    %133 = arith.subf %132, %131 : vector<16x128xf32>
    %134 = arith.addi %0, %5 : i32
    %135 = vector.broadcast %134 : i32 to vector<16x128xi32>
    %136 = arith.addi %135, %1 : vector<16x128xi32>
    %c128_i32 = arith.constant 128 : i32
    %137 = vector.broadcast %c128_i32 : i32 to vector<16x128xi32>
    %138 = arith.muli %136, %137 : vector<16x128xi32>
    %139 = arith.addi %138, %2 : vector<16x128xi32>
    %c8_i32 = arith.constant 8 : i32
    %140 = vector.broadcast %c8_i32 : i32 to vector<16x128xi32>
    %141 = arith.cmpi slt, %139, %140 : vector<16x128xi32>
    %cst_31 = arith.constant 0.000000e+00 : f32
    %142 = vector.broadcast %cst_31 : f32 to vector<16x128xf32>
    %143 = arith.select %141, %133, %142 : vector<16x128xi1>, vector<16x128xf32>
    %144 = vector.extract_strided_slice %143 {offsets = [0, 0], sizes = [8, 128], strides = [1, 1]} : vector<16x128xf32> to vector<8x128xf32>
    %145 = vector.extract_strided_slice %143 {offsets = [8, 0], sizes = [8, 128], strides = [1, 1]} : vector<16x128xf32> to vector<8x128xf32>
    %146 = arith.addf %144, %145 : vector<8x128xf32>
    %147 = arith.addf %3, %146 : vector<8x128xf32>
    %c1_i32 = arith.constant 1 : i32
    %c0_32 = arith.constant 0 : index
    %c0_33 = arith.constant 0 : index
    %c0_34 = arith.constant 0 : index
    %148 = vector.load %arg2[%c0_32, %c0_33, %c0_34] : memref<1x8x128xf32, #tpu.memory_space<vmem>>, vector<1x8x128xf32>
    %149 = vector.shape_cast %148 : vector<1x8x128xf32> to vector<8x128xf32>
    %150 = vector.shape_cast %147 : vector<8x128xf32> to vector<1x8x128xf32>
    tpu.vector_store %arg2[%c0_32, %c0_33, %c0_34], %150 {strides = array<i32>} : memref<1x8x128xf32, #tpu.memory_space<vmem>>, vector<1x8x128xf32>,
    return
  }
  func.func @transform_0(%arg0: i32) -> (i32, i32, i32) {
    %c0_i32 = arith.constant 0 : i32
    %c0_i32_0 = arith.constant 0 : i32
    %c0_i32_1 = arith.constant 0 : i32
    return %c0_i32, %arg0, %c0_i32_0 : i32, i32, i32
  }
  func.func @transform_1(%arg0: i32) -> (i32, i32, i32) {
    %c0_i32 = arith.constant 0 : i32
    %c0_i32_0 = arith.constant 0 : i32
    %c0_i32_1 = arith.constant 0 : i32
    return %arg0, %c0_i32, %c0_i32_0 : i32, i32, i32
  }
}

</mosaic_0001>

<llo_original>
// kernel: siou_loss.1
$region0: #{siou_loss.1}
  #allocation0 [shape = 'u32[]', space=smem, size = 0x4, offset = 0x4, fixed_abs, tag = 'smem constant byte address 0x4 - core index']
  #allocation1 [shape = 'u32[72,128]{1,0:T(1,128)}', space=vmem, size = 0x9000, scoped, tag = 'internal scratch']
  %s0 = inlined_call_operand.vmem [shape: f32[8,16,128], index: 0, kind: input, shape index: {}]
  %s1 = inlined_call_operand.vmem [shape: f32[1,8,128], index: 1, kind: output, shape index: {}]
  %s2 = sld [smem:[#allocation0]]
  $region14: #{siou_loss.1} parent=0
    _
  %s4 = ssub.s32 1, %s2
  %s5 = scalar_select 0, %s4, %s2
  // Predicated region
  $region2: #{siou_loss.1} parent=0 // pred_check
    _
  $region3: #{siou_loss.1} parent=0 // pred_check_branch
    %7 = sbr.rel (0) target = $region5
  $region4: #{siou_loss.1} parent=0 // pred_region
    _
  $region5: #{siou_loss.1} parent=0 // pred_fallthru
    _
  %s8 = smul.u32 0, 16
  %v9 = vlaneseq
  %v10 = vshrl.u32 %v9, 7
  %v11 = vadd.s32 %v10, 8
  %v12 = vlaneseq
  %v13 = vand.u32 %v12, 127
  %v14 = vld [vmem:[%s0] sm:$0xff]
  %v15 = vld [vmem:[%s0 + $0x8] sm:$0xff]
  %s16 = sadd.s32 0, 16
  %s17 = scalar_lea.vmem %s0, %s16
  %v18 = vld [vmem:[%s17] sm:$0xff]
  %v19 = vld [vmem:[%s17 + $0x8] sm:$0xff]
  %s20 = sadd.s32 0, 32
  %s21 = scalar_lea.vmem %s0, %s20
  %v22 = vld [vmem:[%s21] sm:$0xff]
  %v23 = vld [vmem:[%s21 + $0x8] sm:$0xff]
  %s24 = sadd.s32 0, 48
  %s25 = scalar_lea.vmem %s0, %s24
  %v26 = vld [vmem:[%s25] sm:$0xff]
  %v27 = vld [vmem:[%s25 + $0x8] sm:$0xff]
  %s28 = sadd.s32 0, 64
  %s29 = scalar_lea.vmem %s0, %s28
  %v30 = vld [vmem:[%s29] sm:$0xff]
  %v31 = vld [vmem:[%s29 + $0x8] sm:$0xff]
  %s32 = sadd.s32 0, 80
  %s33 = scalar_lea.vmem %s0, %s32
  %v34 = vld [vmem:[%s33] sm:$0xff]
  %v35 = vld [vmem:[%s33 + $0x8] sm:$0xff]
  %s36 = sadd.s32 0, 96
  %s37 = scalar_lea.vmem %s0, %s36
  %v38 = vld [vmem:[%s37] sm:$0xff]
  %v39 = vld [vmem:[%s37 + $0x8] sm:$0xff]
  %s40 = sadd.s32 0, 112
  %s41 = scalar_lea.vmem %s0, %s40
  %v42 = vld [vmem:[%s41] sm:$0xff]
  %v43 = vld [vmem:[%s41 + $0x8] sm:$0xff]
  %v44 = vsub.f32 %v22, %v14
  %v45 = vsub.f32 %v23, %v15
  %v46 = vsub.f32 %v26, %v18
  %v47 = vsub.f32 %v27, %v19
  %v48 = vsub.f32 %v38, %v30
  %v49 = vsub.f32 %v39, %v31
  %v50 = vsub.f32 %v42, %v34
  %v51 = vsub.f32 %v43, %v35
  %v52 = vadd.f32 %v46, 1e-06
  %v53 = vadd.f32 %v47, 1e-06
  %v54 = vadd.f32 %v50, 1e-06
  %v55 = vadd.f32 %v51, 1e-06
  %v56 = vmin.f32 %v22, %v38
  %v57 = vmin.f32 %v23, %v39
  %v58 = vmax.f32 %v14, %v30
  %v59 = vmax.f32 %v15, %v31
  %v60 = vsub.f32 %v56, %v58
  %v61 = vsub.f32 %v57, %v59
  %v62 = vmax.f32 %v60, 0.0
  %v63 = vmax.f32 %v61, 0.0
  %v64 = vmin.f32 %v26, %v42
  %v65 = vmin.f32 %v27, %v43
  %v66 = vmax.f32 %v18, %v34
  %v67 = vmax.f32 %v19, %v35
  %v68 = vsub.f32 %v64, %v66
  %v69 = vsub.f32 %v65, %v67
  %v70 = vmax.f32 %v68, 0.0
  %v71 = vmax.f32 %v69, 0.0
  %v72 = vmul.f32 %v62, %v70
  %v73 = vmul.f32 %v63, %v71
  %v74 = vmul.f32 %v44, %v46
  %v75 = vmul.f32 %v45, %v47
  %v76 = vmul.f32 %v48, %v50
  %v77 = vmul.f32 %v49, %v51
  %v78 = vadd.f32 %v74, %v76
  %v79 = vadd.f32 %v75, %v77
  %v80 = vsub.f32 %v78, %v72
  %v81 = vsub.f32 %v79, %v73
  %v82 = vadd.f32 %v80, 1e-06
  %v83 = vadd.f32 %v81, 1e-06
  %v84 = vrcp.pop %v82
  %v85 = vmul.f32 %v82, %v84
  %v86 = vsub.f32 1.0, %v85
  %v87 = vmul.f32 %v84, %v86
  %v88 = vadd.f32 %v84, %v87
  %vm89 = vweird.f32 %v82
  %vm90 = vweird.f32 %v84
  %vm91 = vmor %vm89, %vm90
  %v92 = vsel %vm91, %v84, %v88
  %v93 = vand.u32 2147483647, %v82
  %vm94 = vcmp.eq.f32.partialorder %v93, 8.507059e+37
  %v95 = vand.u32 %v82, 2147483648
  %v96 = vor.u32 1.1754944e-38, %v95
  %v97 = vsel %vm94, %v96, %v92
  %v98 = vmul.f32 %v72, %v97
  %v99 = vrcp.pop %v83
  %v100 = vmul.f32 %v83, %v99
  %v101 = vsub.f32 1.0, %v100
  %v102 = vmul.f32 %v99, %v101
  %v103 = vadd.f32 %v99, %v102
  %vm104 = vweird.f32 %v83
  %vm105 = vweird.f32 %v99
  %vm106 = vmor %vm104, %vm105
  %v107 = vsel %vm106, %v99, %v103
  %v108 = vand.u32 2147483647, %v83
  %vm109 = vcmp.eq.f32.partialorder %v108, 8.507059e+37
  %v110 = vand.u32 %v83, 2147483648
  %v111 = vor.u32 1.1754944e-38, %v110
  %v112 = vsel %vm109, %v111, %v107
  %v113 = vmul.f32 %v73, %v112
  %v114 = vmax.f32 %v22, %v38
  %v115 = vmax.f32 %v23, %v39
  %v116 = vmin.f32 %v14, %v30
  %v117 = vmin.f32 %v15, %v31
  %v118 = vsub.f32 %v114, %v116
  %v119 = vsub.f32 %v115, %v117
  %v120 = vmax.f32 %v118, 1e-06
  %v121 = vmax.f32 %v119, 1e-06
  %v122 = vmax.f32 %v26, %v42
  %v123 = vmax.f32 %v27, %v43
  %v124 = vmin.f32 %v18, %v34
  %v125 = vmin.f32 %v19, %v35
  %v126 = vsub.f32 %v122, %v124
  %v127 = vsub.f32 %v123, %v125
  %v128 = vmax.f32 %v126, 1e-06
  %v129 = vmax.f32 %v127, 1e-06
  %v130 = vadd.f32 %v30, %v38
  %v131 = vadd.f32 %v31, %v39
  %v132 = vsub.f32 %v130, %v14
  %v133 = vsub.f32 %v131, %v15
  %v134 = vsub.f32 %v132, %v22
  %v135 = vsub.f32 %v133, %v23
  %v136 = vmul.f32 %v134, 0.5
  %v137 = vmul.f32 %v135, 0.5
  %v138 = vadd.f32 %v136, 1e-06
  %v139 = vadd.f32 %v137, 1e-06
  %v140 = vadd.f32 %v34, %v42
  %v141 = vadd.f32 %v35, %v43
  %v142 = vsub.f32 %v140, %v18
  %v143 = vsub.f32 %v141, %v19
  %v144 = vsub.f32 %v142, %v26
  %v145 = vsub.f32 %v143, %v27
  %v146 = vmul.f32 %v144, 0.5
  %v147 = vmul.f32 %v145, 0.5
  %v148 = vadd.f32 %v146, 1e-06
  %v149 = vadd.f32 %v147, 1e-06
  %v150 = vmul.f32 %v138, %v138
  %v151 = vmul.f32 %v139, %v139
  %v152 = vmul.f32 %v148, %v148
  %v153 = vmul.f32 %v149, %v149
  %v154 = vadd.f32 %v150, %v152
  %v155 = vadd.f32 %v151, %v153
  %v156 = vmul.f32 %v138, %v148
  %v157 = vmul.f32 %v139, %v149
  %v158 = vand.u32 2147483647, %v156
  %v159 = vand.u32 2147483647, %v157
  %v160 = vmul.f32 %v158, 2.0
  %v161 = vmul.f32 %v159, 2.0
  %v162 = vrcp.pop %v154
  %v163 = vmul.f32 %v154, %v162
  %v164 = vsub.f32 1.0, %v163
  %v165 = vmul.f32 %v162, %v164
  %v166 = vadd.f32 %v162, %v165
  %vm167 = vweird.f32 %v154
  %vm168 = vweird.f32 %v162
  %vm169 = vmor %vm167, %vm168
  %v170 = vsel %vm169, %v162, %v166
  %v171 = vand.u32 2147483647, %v154
  %vm172 = vcmp.eq.f32.partialorder %v171, 8.507059e+37
  %v173 = vand.u32 %v154, 2147483648
  %v174 = vor.u32 1.1754944e-38, %v173
  %v175 = vsel %vm172, %v174, %v170
  %v176 = vmul.f32 %v160, %v175
  %v177 = vrcp.pop %v155
  %v178 = vmul.f32 %v155, %v177
  %v179 = vsub.f32 1.0, %v178
  %v180 = vmul.f32 %v177, %v179
  %v181 = vadd.f32 %v177, %v180
  %vm182 = vweird.f32 %v155
  %vm183 = vweird.f32 %v177
  %vm184 = vmor %vm182, %vm183
  %v185 = vsel %vm184, %v177, %v181
  %v186 = vand.u32 2147483647, %v155
  %vm187 = vcmp.eq.f32.partialorder %v186, 8.507059e+37
  %v188 = vand.u32 %v155, 2147483648
  %v189 = vor.u32 1.1754944e-38, %v188
  %v190 = vsel %vm187, %v189, %v185
  %v191 = vmul.f32 %v161, %v190
  %v192 = vrcp.pop %v120
  %v193 = vmul.f32 %v120, %v192
  %v194 = vsub.f32 1.0, %v193
  %v195 = vmul.f32 %v192, %v194
  %v196 = vadd.f32 %v192, %v195
  %vm197 = vweird.f32 %v120
  %vm198 = vweird.f32 %v192
  %vm199 = vmor %vm197, %vm198
  %v200 = vsel %vm199, %v192, %v196
  %v201 = vand.u32 2147483647, %v120
  %vm202 = vcmp.eq.f32.partialorder %v201, 8.507059e+37
  %v203 = vand.u32 %v120, 2147483648
  %v204 = vor.u32 1.1754944e-38, %v203
  %v205 = vsel %vm202, %v204, %v200
  %v206 = vmul.f32 %v138, %v205
  %v207 = vrcp.pop %v121
  %v208 = vmul.f32 %v121, %v207
  %v209 = vsub.f32 1.0, %v208
  %v210 = vmul.f32 %v207, %v209
  %v211 = vadd.f32 %v207, %v210
  %vm212 = vweird.f32 %v121
  %vm213 = vweird.f32 %v207
  %vm214 = vmor %vm212, %vm213
  %v215 = vsel %vm214, %v207, %v211
  %v216 = vand.u32 2147483647, %v121
  %vm217 = vcmp.eq.f32.partialorder %v216, 8.507059e+37
  %v218 = vand.u32 %v121, 2147483648
  %v219 = vor.u32 1.1754944e-38, %v218
  %v220 = vsel %vm217, %v219, %v215
  %v221 = vmul.f32 %v139, %v220
  %v222 = vrcp.pop %v128
  %v223 = vmul.f32 %v128, %v222
  %v224 = vsub.f32 1.0, %v223
  %v225 = vmul.f32 %v222, %v224
  %v226 = vadd.f32 %v222, %v225
  %vm227 = vweird.f32 %v128
  %vm228 = vweird.f32 %v222
  %vm229 = vmor %vm227, %vm228
  %v230 = vsel %vm229, %v222, %v226
  %v231 = vand.u32 2147483647, %v128
  %vm232 = vcmp.eq.f32.partialorder %v231, 8.507059e+37
  %v233 = vand.u32 %v128, 2147483648
  %v234 = vor.u32 1.1754944e-38, %v233
  %v235 = vsel %vm232, %v234, %v230
  %v236 = vmul.f32 %v148, %v235
  %v237 = vrcp.pop %v129
  %v238 = vmul.f32 %v129, %v237
  %v239 = vsub.f32 1.0, %v238
  %v240 = vmul.f32 %v237, %v239
  %v241 = vadd.f32 %v237, %v240
  %vm242 = vweird.f32 %v129
  %vm243 = vweird.f32 %v237
  %vm244 = vmor %vm242, %vm243
  %v245 = vsel %vm244, %v237, %v241
  %v246 = vand.u32 2147483647, %v129
  %vm247 = vcmp.eq.f32.partialorder %v246, 8.507059e+37
  %v248 = vand.u32 %v129, 2147483648
  %v249 = vor.u32 1.1754944e-38, %v248
  %v250 = vsel %vm247, %v249, %v245
  %v251 = vmul.f32 %v149, %v250
  %v252 = vmul.f32 %v206, %v206
  %v253 = vmul.f32 %v221, %v221
  %v254 = vmul.f32 %v236, %v236
  %v255 = vmul.f32 %v251, %v251
  %v256 = vsub.f32 2.0, %v176
  %v257 = vsub.f32 2.0, %v191
  %v258 = vmul.f32 %v256, %v252
  %v259 = vmul.f32 %v257, %v253
  %v260 = vmul.f32 %v258, 1.442695
  %v261 = vpow.pop %v260
  %v262 = vmul.f32 %v259, 1.442695
  %v263 = vpow.pop %v262
  %v264 = vsub.f32 2.0, %v261
  %v265 = vsub.f32 2.0, %v263
  %v266 = vmul.f32 %v256, %v254
  %v267 = vmul.f32 %v257, %v255
  %v268 = vmul.f32 %v266, 1.442695
  %v269 = vpow.pop %v268
  %v270 = vmul.f32 %v267, 1.442695
  %v271 = vpow.pop %v270
  %v272 = vsub.f32 %v264, %v269
  %v273 = vsub.f32 %v265, %v271
  %v274 = vsub.f32 %v44, %v48
  %v275 = vsub.f32 %v45, %v49
  %v276 = vand.u32 2147483647, %v274
  %v277 = vand.u32 2147483647, %v275
  %v278 = vmax.f32 %v44, %v48
  %v279 = vmax.f32 %v45, %v49
  %v280 = vrcp.pop %v278
  %v281 = vmul.f32 %v278, %v280
  %v282 = vsub.f32 1.0, %v281
  %v283 = vmul.f32 %v280, %v282
  %v284 = vadd.f32 %v280, %v283
  %vm285 = vweird.f32 %v278
  %vm286 = vweird.f32 %v280
  %vm287 = vmor %vm285, %vm286
  %v288 = vsel %vm287, %v280, %v284
  %v289 = vand.u32 2147483647, %v278
  %vm290 = vcmp.eq.f32.partialorder %v289, 8.507059e+37
  %v291 = vand.u32 %v278, 2147483648
  %v292 = vor.u32 1.1754944e-38, %v291
  %v293 = vsel %vm290, %v292, %v288
  %v294 = vmul.f32 %v276, %v293
  %v295 = vrcp.pop %v279
  %v296 = vmul.f32 %v279, %v295
  %v297 = vsub.f32 1.0, %v296
  %v298 = vmul.f32 %v295, %v297
  %v299 = vadd.f32 %v295, %v298
  %vm300 = vweird.f32 %v279
  %vm301 = vweird.f32 %v295
  %vm302 = vmor %vm300, %vm301
  %v303 = vsel %vm302, %v295, %v299
  %v304 = vand.u32 2147483647, %v279
  %vm305 = vcmp.eq.f32.partialorder %v304, 8.507059e+37
  %v306 = vand.u32 %v279, 2147483648
  %v307 = vor.u32 1.1754944e-38, %v306
  %v308 = vsel %vm305, %v307, %v303
  %v309 = vmul.f32 %v277, %v308
  %v310 = vsub.f32 %v52, %v54
  %v311 = vsub.f32 %v53, %v55
  %v312 = vand.u32 2147483647, %v310
  %v313 = vand.u32 2147483647, %v311
  %v314 = vmax.f32 %v52, %v54
  %v315 = vmax.f32 %v53, %v55
  %v316 = vrcp.pop %v314
  %v317 = vmul.f32 %v314, %v316
  %v318 = vsub.f32 1.0, %v317
  %v319 = vmul.f32 %v316, %v318
  %v320 = vadd.f32 %v316, %v319
  %vm321 = vweird.f32 %v314
  %vm322 = vweird.f32 %v316
  %vm323 = vmor %vm321, %vm322
  %v324 = vsel %vm323, %v316, %v320
  %v325 = vand.u32 2147483647, %v314
  %vm326 = vcmp.eq.f32.partialorder %v325, 8.507059e+37
  %v327 = vand.u32 %v314, 2147483648
  %v328 = vor.u32 1.1754944e-38, %v327
  %v329 = vsel %vm326, %v328, %v324
  %v330 = vmul.f32 %v312, %v329
  %v331 = vrcp.pop %v315
  %v332 = vmul.f32 %v315, %v331
  %v333 = vsub.f32 1.0, %v332
  %v334 = vmul.f32 %v331, %v333
  %v335 = vadd.f32 %v331, %v334
  %vm336 = vweird.f32 %v315
  %vm337 = vweird.f32 %v331
  %vm338 = vmor %vm336, %vm337
  %v339 = vsel %vm338, %v331, %v335
  %v340 = vand.u32 2147483647, %v315
  %vm341 = vcmp.eq.f32.partialorder %v340, 8.507059e+37
  %v342 = vand.u32 %v315, 2147483648
  %v343 = vor.u32 1.1754944e-38, %v342
  %v344 = vsel %vm341, %v343, %v339
  %v345 = vmul.f32 %v313, %v344
  %v346 = vsub.f32 0.0, %v294
  %v347 = vsub.f32 0.0, %v309
  %v348 = vmul.f32 %v346, 1.442695
  %v349 = vpow.pop %v348
  %v350 = vmul.f32 %v347, 1.442695
  %v351 = vpow.pop %v350
  %v352 = vsub.f32 1.0, %v349
  %v353 = vsub.f32 1.0, %v351
  %v354 = vsub.f32 0.0, %v330
  %v355 = vsub.f32 0.0, %v345
  %v356 = vmul.f32 %v354, 1.442695
  %v357 = vpow.pop %v356
  %v358 = vmul.f32 %v355, 1.442695
  %v359 = vpow.pop %v358
  %v360 = vsub.f32 1.0, %v357
  %v361 = vsub.f32 1.0, %v359
  %v362 = vmul.f32 %v352, %v352
  %v363 = vmul.f32 %v353, %v353
  %v364 = vmul.f32 %v360, %v360
  %v365 = vmul.f32 %v361, %v361
  %v366 = vmul.f32 %v362, %v362
  %v367 = vmul.f32 %v363, %v363
  %v368 = vmul.f32 %v364, %v364
  %v369 = vmul.f32 %v365, %v365
  %v370 = vadd.f32 %v366, %v368
  %v371 = vadd.f32 %v367, %v369
  %v372 = vadd.f32 %v272, %v370
  %v373 = vadd.f32 %v273, %v371
  %v374 = vmul.f32 %v372, 0.5
  %v375 = vmul.f32 %v373, 0.5
  %v376 = vsub.f32 %v98, %v374
  %v377 = vsub.f32 %v113, %v375
  %v378 = vmax.f32 %v376, -1.0
  %v379 = vmax.f32 %v377, -1.0
  %v380 = vmin.f32 %v378, 1.0
  %v381 = vmin.f32 %v379, 1.0
  %v382 = vsub.f32 1.0, %v380
  %v383 = vsub.f32 1.0, %v381
  %s384 = sadd.s32 %s8, 0
  %v385 = vstv %s384
  %v386 = vadd.s32 %v385, %v10
  %v387 = vadd.s32 %v385, %v11
  %v388 = vmul.u32 %v386, 128
  %v389 = vmul.u32 %v387, 128
  %v390 = vadd.s32 %v388, %v13
  %v391 = vadd.s32 %v389, %v13
  %vm392 = vcmp.lt.s32.totalorder %v390, 8
  %vm393 = vcmp.lt.s32.totalorder %v391, 8
  %v394 = vsel %vm392, %v382, 0.0
  %v395 = vsel %vm393, %v383, 0.0
  %v396 = vadd.f32 %v394, %v395
  %v397 = vadd.f32 %v396, 0.0
  %398 = vst [vmem:[%s1] sm:$0xff] %v397
  // Predicated region
  $region6: #{siou_loss.1} parent=0 // pred_check
    _
  $region7: #{siou_loss.1} parent=0 // pred_check_branch
    %400 = sbr.rel (0) target = $region9
  $region8: #{siou_loss.1} parent=0 // pred_region
    _
  $region9: #{siou_loss.1} parent=0 // pred_fallthru
    _
  // Predicated region
  $region10: #{siou_loss.1} parent=0 // pred_check
    _
  $region11: #{siou_loss.1} parent=0 // pred_check_branch
    %402 = sbr.rel (0) target = $region13
  $region12: #{siou_loss.1} parent=0 // pred_region
    _
  $region13: #{siou_loss.1} parent=0 // pred_fallthru
    _

</llo_original>
